<compile_context>
chip_gen: v7x
topology: tpu7x:2x2x1
jax: 0.10.0
libtpu: 0.0.40
codegen_flags: <defaults>
</compile_context>

<pallas_src>
import functools

import jax
import jax.numpy as jnp
from jax.experimental import pallas as pl
from jax.experimental.pallas import tpu as pltpu


def _self_attn_kernel(*refs, nhead: int, compute_dtype, fuse_qk: bool, eps: float = 1e-5):
    if fuse_qk:
        (x_ref, pe_ref, w_qk_ref, b_qk_ref, w_v_ref, b_v_ref,
         w_o_ref, b_o_ref, gamma_ref, beta_ref, mask_ref, out_ref) = refs
    else:
        (x_ref, pe_ref, w_q_ref, b_q_ref, w_k_ref, b_k_ref, w_v_ref, b_v_ref,
         w_o_ref, b_o_ref, gamma_ref, beta_ref, mask_ref, out_ref) = refs

    bt, L, d = x_ref.shape
    rows = bt * L

    x = x_ref[...].reshape(rows, d).astype(jnp.float32)            # (rows, d)
    pe = pe_ref[...].reshape(rows, d).astype(jnp.float32)
    qk_in = (x + pe).astype(compute_dtype)                         # q = k = x + pe ; v uses x

    # ---- in-projections (weights pre-transposed, pre-scaled, pre-cast on the host) ----
    if fuse_qk:
        # d % 128 == 0: one fat (rows, d) @ (d, 2d) matmul; the q/k split is tile-aligned.
        qk = jnp.dot(qk_in, w_qk_ref[...],
                     preferred_element_type=jnp.float32) + b_qk_ref[...]     # (rows, 2d)
        q = qk[:, :d]
        k = qk[:, d:]
    else:
        # d % 128 != 0: separate matmuls avoid a lane slice crossing a (8,128) vreg tile.
        q = jnp.dot(qk_in, w_q_ref[...],
                    preferred_element_type=jnp.float32) + b_q_ref[...]       # (rows, d)
        k = jnp.dot(qk_in, w_k_ref[...],
                    preferred_element_type=jnp.float32) + b_k_ref[...]
    v = jnp.dot(x.astype(compute_dtype), w_v_ref[...],
                preferred_element_type=jnp.float32) + b_v_ref[...]           # (rows, d)

    # ---- multi-head attention; K and V stay single (bt, L, d) copies ----
    # mask[h, 0, c] = 1 iff column c belongs to head h. Masking Q restricts the d-contraction
    # to head h's columns with no transpose / lane slice / concat, and heads ride the row
    # (sublane) axis of one batched matmul per step. 1/sqrt(head_dim) is baked into Wq/bq.
    mask4 = mask_ref[...][None]                                    # (1, nhead, 1, d)
    qm = (q.reshape(bt, 1, L, d) * mask4).reshape(bt, nhead * L, d)
    k3 = k.reshape(bt, L, d).astype(compute_dtype)
    v3 = v.reshape(bt, L, d).astype(compute_dtype)

    scores = jnp.einsum("bnd,bkd->bnk", qm.astype(compute_dtype), k3,
                        preferred_element_type=jnp.float32)        # (bt, nhead*L, L)
    scores = scores - jnp.max(scores, axis=-1, keepdims=True)
    p = jnp.exp(scores)
    p = p * pl.reciprocal(jnp.sum(p, axis=-1, keepdims=True), approx=True)

    partial = jnp.einsum("bnk,bkd->bnd", p.astype(compute_dtype), v3,
                         preferred_element_type=jnp.float32)       # (bt, nhead*L, d)
    # fold heads back: output column c comes from head c // head_dim
    attn = (partial.reshape(bt, nhead, L, d) * mask4).sum(axis=1)  # (bt, L, d)
    attn2 = attn.reshape(rows, d).astype(compute_dtype)

    # ---- output projection + dropout(p=0) + residual + LayerNorm (all f32) ----
    proj = jnp.dot(attn2, w_o_ref[...],
                   preferred_element_type=jnp.float32) + b_o_ref[...]
    res = proj + x

    mean = jnp.mean(res, axis=-1, keepdims=True)
    cen = res - mean
    var = jnp.mean(cen * cen, axis=-1, keepdims=True)
    y = cen * jax.lax.rsqrt(var + eps) * gamma_ref[...] + beta_ref[...]

    out_ref[...] = y.reshape(bt, L, d).astype(out_ref.dtype)


def _device_profile():
    """Generation-aware (scoped-VMEM ceiling, prefer_even_grid) with safe fallbacks."""
    kind = ""
    try:
        kind = jax.devices()[0].device_kind.lower()
    except Exception:
        pass
    is_v7x = "7" in kind
    # Per-TensorCore VMEM: 64 MiB on v7x, 128 MiB on v5e/v6e; unknown -> assume the smaller.
    kind_cap = (64 if (is_v7x or not kind) else 128) * 1024 * 1024
    vmem_cap = 0
    try:
        vmem_cap = int(pltpu.get_tpu_info().vmem_capacity_bytes)
    except Exception:
        pass
    vmem_cap = min(vmem_cap, kind_cap) if vmem_cap else kind_cap
    # Leave headroom below physical: <= ~48 MiB on v7x, <= ~96-100 MiB on v5e/v6e.
    vmem_limit = min((vmem_cap * 3) // 4, 100 * 1024 * 1024)
    return vmem_limit, is_v7x


def _est_step_bytes(bt, L, d, nhead):
    """Rough per-grid-step VMEM footprint (f32 intermediates, 2x fudge for temporaries)."""
    f32 = 4
    rows = bt * L
    live = (10 * rows * d + 2 * bt * nhead * L * d + 2 * bt * nhead * L * L) * f32
    blocks = 6 * bt * L * d * f32            # double-buffered x / pe / out blocks
    weights = 4 * d * d * f32 + 16 * d * f32
    return 2 * live + blocks + weights


def _choose_bt(B, L, d, nhead, vmem_limit, prefer_even_grid, target_rows=256):
    """Batch elements per grid step: smallest bt that fills the MXU M dim (>= target_rows)
    among those fitting the VMEM budget, otherwise the fattest that fits (grid=1 is fine on
    v5e/v6e).  On v7x prefer an even grid of length >= 2 so both TensorCores stay busy."""
    divisors = [t for t in range(1, B + 1) if B % t == 0]
    fit = [t for t in divisors if _est_step_bytes(t, L, d, nhead) <= vmem_limit] or [1]

    def pick(cands):
        reach = [t for t in cands if t * L >= target_rows]
        return min(reach) if reach else max(cands)

    bt = pick(fit)
    if prefer_even_grid:
        even = [t for t in fit if (B // t) >= 2 and (B // t) % 2 == 0]
        if even:
            bt = pick(even)
    return bt


def self_attention_layer(x, pe, params, *, nhead, compute_dtype=jnp.bfloat16):
    """x, pe: (B, L, d_model) float32. Returns (B, L, d_model)."""
    B, L, d = x.shape
    assert d % nhead == 0
    hd = d // nhead
    scale = 1.0 / float(hd) ** 0.5

    vmem_limit, is_v7x = _device_profile()
    bt = _choose_bt(B, L, d, nhead, vmem_limit, prefer_even_grid=is_v7x)
    fuse_qk = (d % 128 == 0)

    # Host-side packing. PyTorch linears compute y = x @ W.T + b, so pre-transpose every
    # weight; the 1/sqrt(head_dim) softmax scale is folded into Wq / bq. Matmul weights are
    # stored VMEM-resident in the compute dtype (bf16 by default); biases / LN stay f32.
    wd = compute_dtype
    if fuse_qk:
        w_qk = jnp.concatenate([params["wq"] * scale, params["wk"]], axis=0).T.astype(wd)
        b_qk = jnp.concatenate([params["bq"] * scale, params["bk"]]).reshape(1, 2 * d)
        weight_args = [w_qk, b_qk]
    else:
        weight_args = [(params["wq"] * scale).T.astype(wd), (params["bq"] * scale).reshape(1, d),
                       params["wk"].T.astype(wd), params["bk"].reshape(1, d)]
    weight_args += [params["wv"].T.astype(wd), params["bv"].reshape(1, d),
                    params["wo"].T.astype(wd), params["bo"].reshape(1, d),
                    params["ln_gamma"].reshape(1, d), params["ln_beta"].reshape(1, d)]
    # 0/1 head-selection mask: mask[h, 0, c] = 1 iff c // head_dim == h
    mask = (jnp.arange(d)[None, :] // hd == jnp.arange(nhead)[:, None]
            ).astype(jnp.float32)[:, None, :]                                   # (nhead, 1, d)
    weight_args.append(mask)

    batch_spec = pl.BlockSpec((bt, L, d), lambda b: (b, 0, 0))
    # Constant-index parameters: full-array VMEM residents, no double-buffering.
    resident = pl.BlockSpec(memory_space=pltpu.MemorySpace.VMEM)

    kernel = functools.partial(_self_attn_kernel, nhead=nhead,
                               compute_dtype=compute_dtype, fuse_qk=fuse_qk)

    return pl.pallas_call(
        kernel,
        out_shape=jax.ShapeDtypeStruct((B, L, d), x.dtype),
        grid=(B // bt,),
        in_specs=[batch_spec, batch_spec] + [resident] * len(weight_args),
        out_specs=batch_spec,
        compiler_params=pltpu.CompilerParams(
            dimension_semantics=("parallel",),
            vmem_limit_bytes=vmem_limit,
        ),
    )(x, pe, *weight_args)


def make_params(key, d_model):
    ks = jax.random.split(key, 8)
    s = 1.0 / jnp.sqrt(jnp.float32(d_model))
    return {
        "wq": jax.random.normal(ks[0], (d_model, d_model), jnp.float32) * s,
        "wk": jax.random.normal(ks[1], (d_model, d_model), jnp.float32) * s,
        "wv": jax.random.normal(ks[2], (d_model, d_model), jnp.float32) * s,
        "bq": jax.random.normal(ks[3], (d_model,), jnp.float32) * 0.02,
        "bk": jax.random.normal(ks[4], (d_model,), jnp.float32) * 0.02,
        "bv": jax.random.normal(ks[5], (d_model,), jnp.float32) * 0.02,
        "wo": jax.random.normal(ks[6], (d_model, d_model), jnp.float32) * s,
        "bo": jax.random.normal(ks[7], (d_model,), jnp.float32) * 0.02,
        "ln_gamma": jnp.ones((d_model,), jnp.float32),
        "ln_beta": jnp.zeros((d_model,), jnp.float32),
    }


def _reference(x, pe, params, *, nhead):
    """Pure-JAX f32 reference matching the PyTorch SelfAttentionLayer forward."""
    B, L, d = x.shape
    hd = d // nhead
    qk_in = x + pe
    q = qk_in @ params["wq"].T + params["bq"]
    k = qk_in @ params["wk"].T + params["bk"]
    v = x @ params["wv"].T + params["bv"]

    def split(t):
        return t.reshape(B, L, nhead, hd).transpose(0, 2, 1, 3)

    qh, kh, vh = split(q), split(k), split(v)
    s = jnp.einsum("bhqe,bhke->bhqk", qh, kh) / jnp.sqrt(jnp.float32(hd))
    p = jax.nn.softmax(s, axis=-1)
    o = jnp.einsum("bhqk,bhke->bhqe", p, vh).transpose(0, 2, 1, 3).reshape(B, L, d)
    o = o @ params["wo"].T + params["bo"]
    r = o + x
    mean = r.mean(-1, keepdims=True)
    var = ((r - mean) ** 2).mean(-1, keepdims=True)
    return (r - mean) * jax.lax.rsqrt(var + 1e-5) * params["ln_gamma"] + params["ln_beta"]


def _run_case(B, L, d_model, nhead, seed):
    key = jax.random.PRNGKey(seed)
    kx, kpe, kp = jax.random.split(key, 3)
    x = jax.random.normal(kx, (B, L, d_model), jnp.float32)
    pe = jax.random.normal(kpe, (B, L, d_model), jnp.float32)
    params = make_params(kp, d_model)
    ref = _reference(x, pe, params, nhead=nhead)

    # bf16 MXU compute (default path): f32 accumulation, f32 softmax / LayerNorm.
    out = self_attention_layer(x, pe, params, nhead=nhead)
    jax.block_until_ready(out)
    assert out.shape == (B, L, d_model)
    err = float(jnp.max(jnp.abs(out - ref)))
    assert jnp.allclose(out, ref, atol=8e-2, rtol=8e-2), ("bf16", d_model, err)
    return x, pe, params, ref


if __name__ == "__main__":
    # Small d_model (< 128): separate Q/K matmuls, masked-Q head path.
    x, pe, params, ref = _run_case(B=2, L=8, d_model=32, nhead=4, seed=0)

    # f32 compute path: tight check (also validates the approx-reciprocal softmax).
    out_f32 = self_attention_layer(x, pe, params, nhead=4, compute_dtype=jnp.float32)
    jax.block_until_ready(out_f32)
    err_f32 = float(jnp.max(jnp.abs(out_f32 - ref)))
    assert jnp.allclose(out_f32, ref, atol=2e-2, rtol=2e-2), ("f32", err_f32)

    # Module-default shape (d_model=256, nhead=8): exercises the fused, tile-aligned
    # (d, 2d) Q/K projection branch.
    _run_case(B=2, L=8, d_model=256, nhead=8, seed=1)

    print("KERNEL_OK")
</pallas_src>

<mosaic_0001>
module attributes {stable_mosaic.version = 11 : i64} {
  func.func @_self_attn_kernel(%arg0: i32, %arg1: memref<2x8x32xf32, #tpu.memory_space<vmem>>, %arg2: memref<2x8x32xf32, #tpu.memory_space<vmem>>, %arg3: memref<32x32xbf16, #tpu.memory_space<vmem>>, %arg4: memref<1x32xf32, #tpu.memory_space<vmem>>, %arg5: memref<32x32xbf16, #tpu.memory_space<vmem>>, %arg6: memref<1x32xf32, #tpu.memory_space<vmem>>, %arg7: memref<32x32xbf16, #tpu.memory_space<vmem>>, %arg8: memref<1x32xf32, #tpu.memory_space<vmem>>, %arg9: memref<32x32xbf16, #tpu.memory_space<vmem>>, %arg10: memref<1x32xf32, #tpu.memory_space<vmem>>, %arg11: memref<1x32xf32, #tpu.memory_space<vmem>>, %arg12: memref<1x32xf32, #tpu.memory_space<vmem>>, %arg13: memref<4x1x32xf32, #tpu.memory_space<vmem>>, %arg14: memref<2x8x32xf32, #tpu.memory_space<vmem>>) attributes {dimension_semantics = [#tpu.dimension_semantics<parallel>], iteration_bounds = array<i64: 1>, scalar_prefetch = 0 : i64, scratch_operands = 0 : i64, tpu.core_type = #tpu.core_type<tc>, window_params = [{transform_indices = @transform_0, window_bounds = array<i64: 2, 8, 32>}, {transform_indices = @transform_1, window_bounds = array<i64: 2, 8, 32>}, {pipeline_mode = #tpu.pipeline_mode<synchronous>, transform_indices = @transform_2, window_bounds = array<i64: 32, 32>}, {pipeline_mode = #tpu.pipeline_mode<synchronous>, transform_indices = @transform_3, window_bounds = array<i64: 1, 32>}, {pipeline_mode = #tpu.pipeline_mode<synchronous>, transform_indices = @transform_4, window_bounds = array<i64: 32, 32>}, {pipeline_mode = #tpu.pipeline_mode<synchronous>, transform_indices = @transform_5, window_bounds = array<i64: 1, 32>}, {pipeline_mode = #tpu.pipeline_mode<synchronous>, transform_indices = @transform_6, window_bounds = array<i64: 32, 32>}, {pipeline_mode = #tpu.pipeline_mode<synchronous>, transform_indices = @transform_7, window_bounds = array<i64: 1, 32>}, {pipeline_mode = #tpu.pipeline_mode<synchronous>, transform_indices = @transform_8, window_bounds = array<i64: 32, 32>}, {pipeline_mode = #tpu.pipeline_mode<synchronous>, transform_indices = @transform_9, window_bounds = array<i64: 1, 32>}, {pipeline_mode = #tpu.pipeline_mode<synchronous>, transform_indices = @transform_10, window_bounds = array<i64: 1, 32>}, {pipeline_mode = #tpu.pipeline_mode<synchronous>, transform_indices = @transform_11, window_bounds = array<i64: 1, 32>}, {pipeline_mode = #tpu.pipeline_mode<synchronous>, transform_indices = @transform_12, window_bounds = array<i64: 4, 1, 32>}, {transform_indices = @transform_13, window_bounds = array<i64: 2, 8, 32>}]} {
    %c0 = arith.constant 0 : index
    %c0_0 = arith.constant 0 : index
    %c0_1 = arith.constant 0 : index
    %0 = vector.load %arg1[%c0, %c0_0, %c0_1] : memref<2x8x32xf32, #tpu.memory_space<vmem>>, vector<2x8x32xf32>
    %1 = vector.shape_cast %0 : vector<2x8x32xf32> to vector<16x32xf32>
    %c0_2 = arith.constant 0 : index
    %c0_3 = arith.constant 0 : index
    %c0_4 = arith.constant 0 : index
    %2 = vector.load %arg2[%c0_2, %c0_3, %c0_4] : memref<2x8x32xf32, #tpu.memory_space<vmem>>, vector<2x8x32xf32>
    %3 = vector.shape_cast %2 : vector<2x8x32xf32> to vector<16x32xf32>
    %4 = arith.addf %1, %3 : vector<16x32xf32>
    %5 = arith.truncf %4 : vector<16x32xf32> to vector<16x32xbf16>
    %c0_5 = arith.constant 0 : index
    %c0_6 = arith.constant 0 : index
    %6 = vector.load %arg3[%c0_5, %c0_6] : memref<32x32xbf16, #tpu.memory_space<vmem>>, vector<32x32xbf16>
    %cst = arith.constant dense<0.000000e+00> : vector<16x32xf32>
    %7 = tpu.matmul %5, %6, %cst {dimension_numbers = #tpu.dot_dimension_numbers<[1], [0], [0], [1], [0, 0, 1, 1], [], []>} : vector<16x32xbf16>, vector<32x32xbf16>, vector<16x32xf32> -> vector<16x32xf32>
    %c0_7 = arith.constant 0 : index
    %c0_8 = arith.constant 0 : index
    %8 = vector.load %arg4[%c0_7, %c0_8] : memref<1x32xf32, #tpu.memory_space<vmem>>, vector<1x32xf32>
    %9 = vector.broadcast %8 : vector<1x32xf32> to vector<16x32xf32>
    %10 = arith.addf %7, %9 : vector<16x32xf32>
    %c0_9 = arith.constant 0 : index
    %c0_10 = arith.constant 0 : index
    %11 = vector.load %arg5[%c0_9, %c0_10] : memref<32x32xbf16, #tpu.memory_space<vmem>>, vector<32x32xbf16>
    %cst_11 = arith.constant dense<0.000000e+00> : vector<16x32xf32>
    %12 = tpu.matmul %5, %11, %cst_11 {dimension_numbers = #tpu.dot_dimension_numbers<[1], [0], [0], [1], [0, 0, 1, 1], [], []>} : vector<16x32xbf16>, vector<32x32xbf16>, vector<16x32xf32> -> vector<16x32xf32>
    %c0_12 = arith.constant 0 : index
    %c0_13 = arith.constant 0 : index
    %13 = vector.load %arg6[%c0_12, %c0_13] : memref<1x32xf32, #tpu.memory_space<vmem>>, vector<1x32xf32>
    %14 = vector.broadcast %13 : vector<1x32xf32> to vector<16x32xf32>
    %15 = arith.addf %12, %14 : vector<16x32xf32>
    %16 = arith.truncf %1 : vector<16x32xf32> to vector<16x32xbf16>
    %c0_14 = arith.constant 0 : index
    %c0_15 = arith.constant 0 : index
    %17 = vector.load %arg7[%c0_14, %c0_15] : memref<32x32xbf16, #tpu.memory_space<vmem>>, vector<32x32xbf16>
    %cst_16 = arith.constant dense<0.000000e+00> : vector<16x32xf32>
    %18 = tpu.matmul %16, %17, %cst_16 {dimension_numbers = #tpu.dot_dimension_numbers<[1], [0], [0], [1], [0, 0, 1, 1], [], []>} : vector<16x32xbf16>, vector<32x32xbf16>, vector<16x32xf32> -> vector<16x32xf32>
    %c0_17 = arith.constant 0 : index
    %c0_18 = arith.constant 0 : index
    %19 = vector.load %arg8[%c0_17, %c0_18] : memref<1x32xf32, #tpu.memory_space<vmem>>, vector<1x32xf32>
    %20 = vector.broadcast %19 : vector<1x32xf32> to vector<16x32xf32>
    %21 = arith.addf %18, %20 : vector<16x32xf32>
    %c0_19 = arith.constant 0 : index
    %c0_20 = arith.constant 0 : index
    %c0_21 = arith.constant 0 : index
    %22 = vector.load %arg13[%c0_19, %c0_20, %c0_21] : memref<4x1x32xf32, #tpu.memory_space<vmem>>, vector<4x1x32xf32>
    %23 = vector.shape_cast %22 : vector<4x1x32xf32> to vector<1x4x1x32xf32>
    %24 = vector.shape_cast %10 : vector<16x32xf32> to vector<2x1x8x32xf32>
    %25 = vector.broadcast %24 : vector<2x1x8x32xf32> to vector<2x4x8x32xf32>
    %26 = vector.broadcast %23 : vector<1x4x1x32xf32> to vector<2x4x8x32xf32>
    %27 = arith.mulf %25, %26 : vector<2x4x8x32xf32>
    %28 = vector.shape_cast %27 : vector<2x4x8x32xf32> to vector<2x32x32xf32>
    %29 = vector.shape_cast %15 : vector<16x32xf32> to vector<2x8x32xf32>
    %30 = arith.truncf %29 : vector<2x8x32xf32> to vector<2x8x32xbf16>
    %31 = vector.shape_cast %21 : vector<16x32xf32> to vector<2x8x32xf32>
    %32 = arith.truncf %31 : vector<2x8x32xf32> to vector<2x8x32xbf16>
    %33 = arith.truncf %28 : vector<2x32x32xf32> to vector<2x32x32xbf16>
    "tpu.trace_start"() <{level = 10 : i32, message = "bnd,bkd->bnk"}> : () -> ()
    %cst_22 = arith.constant dense<0.000000e+00> : vector<2x32x8xf32>
    %34 = tpu.matmul %33, %30, %cst_22 {dimension_numbers = #tpu.dot_dimension_numbers<[2], [2], [1], [1], [0, 0, 0, 1, 1, 1], [0], [0]>} : vector<2x32x32xbf16>, vector<2x8x32xbf16>, vector<2x32x8xf32> -> vector<2x32x8xf32>
    "tpu.trace_stop"() : () -> ()
    %cst_23 = arith.constant dense<0xFF800000> : vector<2x32xf32>
    %35 = vector.multi_reduction <maximumf>, %34, %cst_23 [2] : vector<2x32x8xf32> to vector<2x32xf32>
    %36 = vector.shape_cast %35 : vector<2x32xf32> to vector<2x32x1xf32>
    %37 = vector.broadcast %36 : vector<2x32x1xf32> to vector<2x32x8xf32>
    %38 = arith.subf %34, %37 : vector<2x32x8xf32>
    %39 = math.exp %38 : vector<2x32x8xf32>
    %cst_24 = arith.constant dense<0.000000e+00> : vector<2x32xf32>
    %40 = vector.multi_reduction <add>, %39, %cst_24 [2] : vector<2x32x8xf32> to vector<2x32xf32>
    %41 = vector.shape_cast %40 : vector<2x32xf32> to vector<2x32x1xf32>
    %42 = tpu.reciprocal %41 {approx = true} : vector<2x32x1xf32> -> vector<2x32x1xf32>
    %43 = vector.broadcast %42 : vector<2x32x1xf32> to vector<2x32x8xf32>
    %44 = arith.mulf %39, %43 : vector<2x32x8xf32>
    %45 = arith.truncf %44 : vector<2x32x8xf32> to vector<2x32x8xbf16>
    "tpu.trace_start"() <{level = 10 : i32, message = "bnk,bkd->bnd"}> : () -> ()
    %cst_25 = arith.constant dense<0.000000e+00> : vector<2x32x32xf32>
    %46 = tpu.matmul %45, %32, %cst_25 {dimension_numbers = #tpu.dot_dimension_numbers<[2], [1], [1], [2], [0, 0, 0, 1, 1, 2], [0], [0]>} : vector<2x32x8xbf16>, vector<2x8x32xbf16>, vector<2x32x32xf32> -> vector<2x32x32xf32>
    "tpu.trace_stop"() : () -> ()
    %47 = vector.shape_cast %46 : vector<2x32x32xf32> to vector<2x4x8x32xf32>
    %48 = vector.broadcast %23 : vector<1x4x1x32xf32> to vector<2x4x8x32xf32>
    %49 = arith.mulf %47, %48 : vector<2x4x8x32xf32>
    %cst_26 = arith.constant dense<0.000000e+00> : vector<2x8x32xf32>
    %50 = vector.multi_reduction <add>, %49, %cst_26 [1] : vector<2x4x8x32xf32> to vector<2x8x32xf32>
    %51 = vector.shape_cast %50 : vector<2x8x32xf32> to vector<16x32xf32>
    %52 = arith.truncf %51 : vector<16x32xf32> to vector<16x32xbf16>
    %c0_27 = arith.constant 0 : index
    %c0_28 = arith.constant 0 : index
    %53 = vector.load %arg9[%c0_27, %c0_28] : memref<32x32xbf16, #tpu.memory_space<vmem>>, vector<32x32xbf16>
    %cst_29 = arith.constant dense<0.000000e+00> : vector<16x32xf32>
    %54 = tpu.matmul %52, %53, %cst_29 {dimension_numbers = #tpu.dot_dimension_numbers<[1], [0], [0], [1], [0, 0, 1, 1], [], []>} : vector<16x32xbf16>, vector<32x32xbf16>, vector<16x32xf32> -> vector<16x32xf32>
    %c0_30 = arith.constant 0 : index
    %c0_31 = arith.constant 0 : index
    %55 = vector.load %arg10[%c0_30, %c0_31] : memref<1x32xf32, #tpu.memory_space<vmem>>, vector<1x32xf32>
    %56 = vector.broadcast %55 : vector<1x32xf32> to vector<16x32xf32>
    %57 = arith.addf %54, %56 : vector<16x32xf32>
    %58 = arith.addf %57, %1 : vector<16x32xf32>
    %cst_32 = arith.constant dense<0.000000e+00> : vector<16xf32>
    %59 = vector.multi_reduction <add>, %58, %cst_32 [1] : vector<16x32xf32> to vector<16xf32>
    %60 = vector.shape_cast %59 : vector<16xf32> to vector<16x1xf32>
    %cst_33 = arith.constant 3.200000e+01 : f32
    %61 = vector.broadcast %cst_33 : f32 to vector<16x1xf32>
    %62 = arith.divf %60, %61 : vector<16x1xf32>
    %63 = vector.broadcast %62 : vector<16x1xf32> to vector<16x32xf32>
    %64 = arith.subf %58, %63 : vector<16x32xf32>
    %65 = arith.mulf %64, %64 : vector<16x32xf32>
    %cst_34 = arith.constant dense<0.000000e+00> : vector<16xf32>
    %66 = vector.multi_reduction <add>, %65, %cst_34 [1] : vector<16x32xf32> to vector<16xf32>
    %67 = vector.shape_cast %66 : vector<16xf32> to vector<16x1xf32>
    %cst_35 = arith.constant 3.200000e+01 : f32
    %68 = vector.broadcast %cst_35 : f32 to vector<16x1xf32>
    %69 = arith.divf %67, %68 : vector<16x1xf32>
    %cst_36 = arith.constant 9.99999974E-6 : f32
    %70 = vector.broadcast %cst_36 : f32 to vector<16x1xf32>
    %71 = arith.addf %69, %70 : vector<16x1xf32>
    %72 = math.rsqrt %71 : vector<16x1xf32>
    %73 = vector.broadcast %72 : vector<16x1xf32> to vector<16x32xf32>
    %74 = arith.mulf %64, %73 : vector<16x32xf32>
    %c0_37 = arith.constant 0 : index
    %c0_38 = arith.constant 0 : index
    %75 = vector.load %arg11[%c0_37, %c0_38] : memref<1x32xf32, #tpu.memory_space<vmem>>, vector<1x32xf32>
    %76 = vector.broadcast %75 : vector<1x32xf32> to vector<16x32xf32>
    %77 = arith.mulf %74, %76 : vector<16x32xf32>
    %c0_39 = arith.constant 0 : index
    %c0_40 = arith.constant 0 : index
    %78 = vector.load %arg12[%c0_39, %c0_40] : memref<1x32xf32, #tpu.memory_space<vmem>>, vector<1x32xf32>
    %79 = vector.broadcast %78 : vector<1x32xf32> to vector<16x32xf32>
    %80 = arith.addf %77, %79 : vector<16x32xf32>
    %81 = vector.shape_cast %80 : vector<16x32xf32> to vector<2x8x32xf32>
    %c0_41 = arith.constant 0 : index
    %c0_42 = arith.constant 0 : index
    %c0_43 = arith.constant 0 : index
    %82 = vector.load %arg14[%c0_41, %c0_42, %c0_43] : memref<2x8x32xf32, #tpu.memory_space<vmem>>, vector<2x8x32xf32>
    tpu.vector_store %arg14[%c0_41, %c0_42, %c0_43], %81 {strides = array<i32>} : memref<2x8x32xf32, #tpu.memory_space<vmem>>, vector<2x8x32xf32>,
    return
  }
  func.func @transform_0(%arg0: i32) -> (i32, i32, i32) {
    %c0_i32 = arith.constant 0 : i32
    %c0_i32_0 = arith.constant 0 : i32
    %c0_i32_1 = arith.constant 0 : i32
    return %arg0, %c0_i32, %c0_i32_0 : i32, i32, i32
  }
  func.func @transform_1(%arg0: i32) -> (i32, i32, i32) {
    %c0_i32 = arith.constant 0 : i32
    %c0_i32_0 = arith.constant 0 : i32
    %c0_i32_1 = arith.constant 0 : i32
    return %arg0, %c0_i32, %c0_i32_0 : i32, i32, i32
  }
  func.func @transform_2(%arg0: i32) -> (i32, i32) {
    %c0_i32 = arith.constant 0 : i32
    %c0_i32_0 = arith.constant 0 : i32
    %c0_i32_1 = arith.constant 0 : i32
    return %c0_i32, %c0_i32_0 : i32, i32
  }
  func.func @transform_3(%arg0: i32) -> (i32, i32) {
    %c0_i32 = arith.constant 0 : i32
    %c0_i32_0 = arith.constant 0 : i32
    %c0_i32_1 = arith.constant 0 : i32
    return %c0_i32, %c0_i32_0 : i32, i32
  }
  func.func @transform_4(%arg0: i32) -> (i32, i32) {
    %c0_i32 = arith.constant 0 : i32
    %c0_i32_0 = arith.constant 0 : i32
    %c0_i32_1 = arith.constant 0 : i32
    return %c0_i32, %c0_i32_0 : i32, i32
  }
  func.func @transform_5(%arg0: i32) -> (i32, i32) {
    %c0_i32 = arith.constant 0 : i32
    %c0_i32_0 = arith.constant 0 : i32
    %c0_i32_1 = arith.constant 0 : i32
    return %c0_i32, %c0_i32_0 : i32, i32
  }
  func.func @transform_6(%arg0: i32) -> (i32, i32) {
    %c0_i32 = arith.constant 0 : i32
    %c0_i32_0 = arith.constant 0 : i32
    %c0_i32_1 = arith.constant 0 : i32
    return %c0_i32, %c0_i32_0 : i32, i32
  }
  func.func @transform_7(%arg0: i32) -> (i32, i32) {
    %c0_i32 = arith.constant 0 : i32
    %c0_i32_0 = arith.constant 0 : i32
    %c0_i32_1 = arith.constant 0 : i32
    return %c0_i32, %c0_i32_0 : i32, i32
  }
  func.func @transform_8(%arg0: i32) -> (i32, i32) {
    %c0_i32 = arith.constant 0 : i32
    %c0_i32_0 = arith.constant 0 : i32
    %c0_i32_1 = arith.constant 0 : i32
    return %c0_i32, %c0_i32_0 : i32, i32
  }
  func.func @transform_9(%arg0: i32) -> (i32, i32) {
    %c0_i32 = arith.constant 0 : i32
    %c0_i32_0 = arith.constant 0 : i32
    %c0_i32_1 = arith.constant 0 : i32
    return %c0_i32, %c0_i32_0 : i32, i32
  }
  func.func @transform_10(%arg0: i32) -> (i32, i32) {
    %c0_i32 = arith.constant 0 : i32
    %c0_i32_0 = arith.constant 0 : i32
    %c0_i32_1 = arith.constant 0 : i32
    return %c0_i32, %c0_i32_0 : i32, i32
  }
  func.func @transform_11(%arg0: i32) -> (i32, i32) {
    %c0_i32 = arith.constant 0 : i32
    %c0_i32_0 = arith.constant 0 : i32
    %c0_i32_1 = arith.constant 0 : i32
    return %c0_i32, %c0_i32_0 : i32, i32
  }
  func.func @transform_12(%arg0: i32) -> (i32, i32, i32) {
    %c0_i32 = arith.constant 0 : i32
    %c0_i32_0 = arith.constant 0 : i32
    %c0_i32_1 = arith.constant 0 : i32
    %c0_i32_2 = arith.constant 0 : i32
    return %c0_i32, %c0_i32_0, %c0_i32_1 : i32, i32, i32
  }
  func.func @transform_13(%arg0: i32) -> (i32, i32, i32) {
    %c0_i32 = arith.constant 0 : i32
    %c0_i32_0 = arith.constant 0 : i32
    %c0_i32_1 = arith.constant 0 : i32
    return %arg0, %c0_i32, %c0_i32_0 : i32, i32, i32
  }
}

</mosaic_0001>

<llo_original>
// kernel: tpu_custom_call.1
$region0: #{tpu_custom_call.1}
  #allocation0 [shape = 'u32[]', space=smem, size = 0x4, offset = 0x4, fixed_abs, tag = 'smem constant byte address 0x4 - core index']
  #allocation1 [shape = 'u32[144,128]{1,0:T(1,128)}', space=vmem, size = 0x12000, scoped, tag = 'internal scratch']
  %s0 = inlined_call_operand.hbm [shape: f32[2,8,32], index: 0, kind: input, shape index: {}]
  %s1 = inlined_call_operand.hbm [shape: f32[2,8,32], index: 1, kind: input, shape index: {}]
  %s2 = inlined_call_operand.hbm [shape: bf16[32,32], index: 2, kind: input, shape index: {}]
  %s3 = inlined_call_operand.hbm [shape: f32[1,32], index: 3, kind: input, shape index: {}]
  %s4 = inlined_call_operand.hbm [shape: bf16[32,32], index: 4, kind: input, shape index: {}]
  %s5 = inlined_call_operand.hbm [shape: f32[1,32], index: 5, kind: input, shape index: {}]
  %s6 = inlined_call_operand.hbm [shape: bf16[32,32], index: 6, kind: input, shape index: {}]
  %s7 = inlined_call_operand.hbm [shape: f32[1,32], index: 7, kind: input, shape index: {}]
  %s8 = inlined_call_operand.hbm [shape: bf16[32,32], index: 8, kind: input, shape index: {}]
  %s9 = inlined_call_operand.hbm [shape: f32[1,32], index: 9, kind: input, shape index: {}]
  %s10 = inlined_call_operand.hbm [shape: f32[1,32], index: 10, kind: input, shape index: {}]
  %s11 = inlined_call_operand.hbm [shape: f32[1,32], index: 11, kind: input, shape index: {}]
  %s12 = inlined_call_operand.hbm [shape: f32[4,1,32], index: 12, kind: input, shape index: {}]
  %s13 = inlined_call_operand.hbm [shape: f32[2,8,32], index: 13, kind: output, shape index: {}]
  %s14 = sld [smem:[#allocation0]]
  $region114: #{tpu_custom_call.1} parent=0
    _
  %s16 = ssub.s32 1, %s14
  %s17 = scalar_select 0, %s16, %s14
  $region1: #{tpu_custom_call.1} parent=0
    #allocation2 [shape = 'u8[8192]{0}', space=vmem, size = 0x2000, scoped, tag = 'input window, operand 0, single buffered']
    #allocation3 [shape = 's32[1]{0}', space=sflag, size = 0x4, scoped, tag = 'scoped memory for tpu_custom_call.1']
    #allocation4 [shape = 's32[1]{0}', space=sflag, size = 0x4, scoped, tag = 'scoped memory for tpu_custom_call.1']
    #allocation5 [shape = 'u8[8192]{0}', space=vmem, size = 0x2000, scoped, tag = 'input window, operand 1, single buffered']
    #allocation6 [shape = 's32[1]{0}', space=sflag, size = 0x4, scoped, tag = 'scoped memory for tpu_custom_call.1']
    #allocation7 [shape = 'u8[8192]{0}', space=vmem, size = 0x2000, scoped, tag = 'input window, operand 2, single buffered']
    #allocation8 [shape = 'u8[512]{0}', space=vmem, size = 0x400, scoped, tag = 'input window, operand 3, single buffered']
    #allocation9 [shape = 's32[1]{0}', space=sflag, size = 0x4, scoped, tag = 'scoped memory for tpu_custom_call.1']
    #allocation10 [shape = 'u8[8192]{0}', space=vmem, size = 0x2000, scoped, tag = 'input window, operand 4, single buffered']
    #allocation11 [shape = 'u8[512]{0}', space=vmem, size = 0x400, scoped, tag = 'input window, operand 5, single buffered']
    #allocation12 [shape = 's32[1]{0}', space=sflag, size = 0x4, scoped, tag = 'scoped memory for tpu_custom_call.1']
    #allocation13 [shape = 'u8[8192]{0}', space=vmem, size = 0x2000, scoped, tag = 'input window, operand 6, single buffered']
    #allocation14 [shape = 'u8[512]{0}', space=vmem, size = 0x400, scoped, tag = 'input window, operand 7, single buffered']
    #allocation15 [shape = 's32[1]{0}', space=sflag, size = 0x4, scoped, tag = 'scoped memory for tpu_custom_call.1']
    #allocation16 [shape = 'u8[8192]{0}', space=vmem, size = 0x2000, scoped, tag = 'input window, operand 8, single buffered']
    #allocation17 [shape = 'u8[512]{0}', space=vmem, size = 0x400, scoped, tag = 'input window, operand 9, single buffered']
    #allocation18 [shape = 's32[1]{0}', space=sflag, size = 0x4, scoped, tag = 'scoped memory for tpu_custom_call.1']
    #allocation19 [shape = 'u8[512]{0}', space=vmem, size = 0x400, scoped, tag = 'input window, operand 10, single buffered']
    #allocation20 [shape = 'u8[512]{0}', space=vmem, size = 0x400, scoped, tag = 'input window, operand 11, single buffered']
    #allocation21 [shape = 's32[1]{0}', space=sflag, size = 0x4, scoped, tag = 'scoped memory for tpu_custom_call.1']
    #allocation22 [shape = 'u8[2048]{0}', space=vmem, size = 0x800, scoped, tag = 'input window, operand 12, single buffered']
    #allocation23 [shape = 'u8[8192]{0}', space=vmem, size = 0x2000, scoped, tag = 'output window, operand 0, single buffered']
    %18 = vsyncpa [#allocation3], 0
    %19 = vsyncpa [#allocation6], 0
    %20 = vsyncpa [#allocation9], 0
    %21 = vsyncpa [#allocation12], 0
    %22 = vsyncpa [#allocation15], 0
    %23 = vsyncpa [#allocation18], 0
    %24 = vsyncpa [#allocation21], 0
    %25 = vsyncpa [#allocation4], 0
    // Predicated region
    $region2: #{tpu_custom_call.1} parent=1 // pred_check
      _
    $region3: #{tpu_custom_call.1} parent=1 // pred_check_branch
      %27 = sbr.rel (0) target = $region5
    $region4: #{tpu_custom_call.1} parent=1 // pred_region
      %s29 = ssub.s32 256, 256
      %30 = vsyncadd [#allocation3], %s29
      %s31 = sshll.u32 [#allocation2], 4
      %s32 = int_to_ptr.vmem [resolvable:$true] %s31
      %37 = dma.hbm_to_vmem [thread:$0]  %s0, 256, %s32, [#allocation3], 128, 128, 8
    $region5: #{tpu_custom_call.1} parent=1 // pred_fallthru
      _
    // Predicated region
    $region6: #{tpu_custom_call.1} parent=1 // pred_check
      _
    $region7: #{tpu_custom_call.1} parent=1 // pred_check_branch
      %39 = sbr.rel (0) target = $region9
    $region8: #{tpu_custom_call.1} parent=1 // pred_region
      %s41 = ssub.s32 256, 256
      %42 = vsyncadd [#allocation6], %s41
      %s43 = sshll.u32 [#allocation5], 4
      %s44 = int_to_ptr.vmem [resolvable:$true] %s43
      %49 = dma.hbm_to_vmem [thread:$0]  %s1, 256, %s44, [#allocation6], 128, 128, 8
    $region9: #{tpu_custom_call.1} parent=1 // pred_fallthru
      _
    // Predicated region
    $region10: #{tpu_custom_call.1} parent=1 // pred_check
      _
    $region11: #{tpu_custom_call.1} parent=1 // pred_check_branch
      %51 = sbr.rel (0) target = $region13
    $region12: #{tpu_custom_call.1} parent=1 // pred_region
      %s53 = ssub.s32 256, 256
      %54 = vsyncadd [#allocation6], %s53
      %s55 = sshll.u32 [#allocation7], 4
      %s56 = int_to_ptr.vmem [resolvable:$true] %s55
      %61 = dma.hbm_to_vmem [thread:$0]  %s2, 256, %s56, [#allocation6], 64, 64, 4
    $region13: #{tpu_custom_call.1} parent=1 // pred_fallthru
      _
    // Predicated region
    $region14: #{tpu_custom_call.1} parent=1 // pred_check
      _
    $region15: #{tpu_custom_call.1} parent=1 // pred_check_branch
      %63 = sbr.rel (0) target = $region17
    $region16: #{tpu_custom_call.1} parent=1 // pred_region
      %s65 = ssub.s32 16, 16
      %66 = vsyncadd [#allocation9], %s65
      %s68 = sshll.u32 [#allocation8], 4
      %s69 = int_to_ptr.vmem [resolvable:$true] %s68
      %71 = dma.hbm_to_vmem [thread:$0]  %s3, 16, %s69, [#allocation9]
    $region17: #{tpu_custom_call.1} parent=1 // pred_fallthru
      _
    // Predicated region
    $region18: #{tpu_custom_call.1} parent=1 // pred_check
      _
    $region19: #{tpu_custom_call.1} parent=1 // pred_check_branch
      %73 = sbr.rel (0) target = $region21
    $region20: #{tpu_custom_call.1} parent=1 // pred_region
      %s75 = ssub.s32 256, 256
      %76 = vsyncadd [#allocation9], %s75
      %s77 = sshll.u32 [#allocation10], 4
      %s78 = int_to_ptr.vmem [resolvable:$true] %s77
      %83 = dma.hbm_to_vmem [thread:$0]  %s4, 256, %s78, [#allocation9], 64, 64, 4
    $region21: #{tpu_custom_call.1} parent=1 // pred_fallthru
      _
    // Predicated region
    $region22: #{tpu_custom_call.1} parent=1 // pred_check
      _
    $region23: #{tpu_custom_call.1} parent=1 // pred_check_branch
      %85 = sbr.rel (0) target = $region25
    $region24: #{tpu_custom_call.1} parent=1 // pred_region
      %s87 = ssub.s32 16, 16
      %88 = vsyncadd [#allocation12], %s87
      %s90 = sshll.u32 [#allocation11], 4
      %s91 = int_to_ptr.vmem [resolvable:$true] %s90
      %93 = dma.hbm_to_vmem [thread:$0]  %s5, 16, %s91, [#allocation12]
    $region25: #{tpu_custom_call.1} parent=1 // pred_fallthru
      _
    // Predicated region
    $region26: #{tpu_custom_call.1} parent=1 // pred_check
      _
    $region27: #{tpu_custom_call.1} parent=1 // pred_check_branch
      %95 = sbr.rel (0) target = $region29
    $region28: #{tpu_custom_call.1} parent=1 // pred_region
      %s97 = ssub.s32 256, 256
      %98 = vsyncadd [#allocation12], %s97
      %s99 = sshll.u32 [#allocation13], 4
      %s100 = int_to_ptr.vmem [resolvable:$true] %s99
      %105 = dma.hbm_to_vmem [thread:$0]  %s6, 256, %s100, [#allocation12], 64, 64, 4
    $region29: #{tpu_custom_call.1} parent=1 // pred_fallthru
      _
    // Predicated region
    $region30: #{tpu_custom_call.1} parent=1 // pred_check
      _
    $region31: #{tpu_custom_call.1} parent=1 // pred_check_branch
      %107 = sbr.rel (0) target = $region33
    $region32: #{tpu_custom_call.1} parent=1 // pred_region
      %s109 = ssub.s32 16, 16
      %110 = vsyncadd [#allocation15], %s109
      %s112 = sshll.u32 [#allocation14], 4
      %s113 = int_to_ptr.vmem [resolvable:$true] %s112
      %115 = dma.hbm_to_vmem [thread:$0]  %s7, 16, %s113, [#allocation15]
    $region33: #{tpu_custom_call.1} parent=1 // pred_fallthru
      _
    // Predicated region
    $region34: #{tpu_custom_call.1} parent=1 // pred_check
      _
    $region35: #{tpu_custom_call.1} parent=1 // pred_check_branch
      %117 = sbr.rel (0) target = $region37
    $region36: #{tpu_custom_call.1} parent=1 // pred_region
      %s119 = ssub.s32 256, 256
      %120 = vsyncadd [#allocation15], %s119
      %s121 = sshll.u32 [#allocation16], 4
      %s122 = int_to_ptr.vmem [resolvable:$true] %s121
      %127 = dma.hbm_to_vmem [thread:$0]  %s8, 256, %s122, [#allocation15], 64, 64, 4
    $region37: #{tpu_custom_call.1} parent=1 // pred_fallthru
      _
    // Predicated region
    $region38: #{tpu_custom_call.1} parent=1 // pred_check
      _
    $region39: #{tpu_custom_call.1} parent=1 // pred_check_branch
      %129 = sbr.rel (0) target = $region41
    $region40: #{tpu_custom_call.1} parent=1 // pred_region
      %s131 = ssub.s32 16, 16
      %132 = vsyncadd [#allocation18], %s131
      %s134 = sshll.u32 [#allocation17], 4
      %s135 = int_to_ptr.vmem [resolvable:$true] %s134
      %137 = dma.hbm_to_vmem [thread:$0]  %s9, 16, %s135, [#allocation18]
    $region41: #{tpu_custom_call.1} parent=1 // pred_fallthru
      _
    // Predicated region
    $region42: #{tpu_custom_call.1} parent=1 // pred_check
      _
    $region43: #{tpu_custom_call.1} parent=1 // pred_check_branch
      %139 = sbr.rel (0) target = $region45
    $region44: #{tpu_custom_call.1} parent=1 // pred_region
      %s141 = ssub.s32 16, 16
      %142 = vsyncadd [#allocation18], %s141
      %s144 = sshll.u32 [#allocation19], 4
      %s145 = int_to_ptr.vmem [resolvable:$true] %s144
      %147 = dma.hbm_to_vmem [thread:$0]  %s10, 16, %s145, [#allocation18]
    $region45: #{tpu_custom_call.1} parent=1 // pred_fallthru
      _
    // Predicated region
    $region46: #{tpu_custom_call.1} parent=1 // pred_check
      _
    $region47: #{tpu_custom_call.1} parent=1 // pred_check_branch
      %149 = sbr.rel (0) target = $region49
    $region48: #{tpu_custom_call.1} parent=1 // pred_region
      %s151 = ssub.s32 16, 16
      %152 = vsyncadd [#allocation21], %s151
      %s154 = sshll.u32 [#allocation20], 4
      %s155 = int_to_ptr.vmem [resolvable:$true] %s154
      %157 = dma.hbm_to_vmem [thread:$0]  %s11, 16, %s155, [#allocation21]
    $region49: #{tpu_custom_call.1} parent=1 // pred_fallthru
      _
    // Predicated region
    $region50: #{tpu_custom_call.1} parent=1 // pred_check
      _
    $region51: #{tpu_custom_call.1} parent=1 // pred_check_branch
      %159 = sbr.rel (0) target = $region53
    $region52: #{tpu_custom_call.1} parent=1 // pred_region
      %s161 = ssub.s32 64, 64
      %162 = vsyncadd [#allocation21], %s161
      %s163 = sshll.u32 [#allocation22], 4
      %s164 = int_to_ptr.vmem [resolvable:$true] %s163
      %169 = dma.hbm_to_vmem [thread:$0]  %s12, 64, %s164, [#allocation21], 16, 16, 1
    $region53: #{tpu_custom_call.1} parent=1 // pred_fallthru
      _
    // Predicated region
    $region54: #{tpu_custom_call.1} parent=1 // pred_check
      _
    $region55: #{tpu_custom_call.1} parent=1 // pred_check_branch
      %171 = sbr.rel (0) target = $region57
    $region56: #{tpu_custom_call.1} parent=1 // pred_region
      %172 = dma.done [#allocation3], 256
    $region57: #{tpu_custom_call.1} parent=1 // pred_fallthru
      _
    // Predicated region
    $region58: #{tpu_custom_call.1} parent=1 // pred_check
      _
    $region59: #{tpu_custom_call.1} parent=1 // pred_check_branch
      %174 = sbr.rel (0) target = $region61
    $region60: #{tpu_custom_call.1} parent=1 // pred_region
      %175 = dma.done [#allocation6], 256
    $region61: #{tpu_custom_call.1} parent=1 // pred_fallthru
      _
    // Predicated region
    $region62: #{tpu_custom_call.1} parent=1 // pred_check
      _
    $region63: #{tpu_custom_call.1} parent=1 // pred_check_branch
      %177 = sbr.rel (0) target = $region65
    $region64: #{tpu_custom_call.1} parent=1 // pred_region
      %178 = dma.done [#allocation6], 256
    $region65: #{tpu_custom_call.1} parent=1 // pred_fallthru
      _
    // Predicated region
    $region66: #{tpu_custom_call.1} parent=1 // pred_check
      _
    $region67: #{tpu_custom_call.1} parent=1 // pred_check_branch
      %180 = sbr.rel (0) target = $region69
    $region68: #{tpu_custom_call.1} parent=1 // pred_region
      %181 = dma.done [#allocation9], 16
    $region69: #{tpu_custom_call.1} parent=1 // pred_fallthru
      _
    // Predicated region
    $region70: #{tpu_custom_call.1} parent=1 // pred_check
      _
    $region71: #{tpu_custom_call.1} parent=1 // pred_check_branch
      %183 = sbr.rel (0) target = $region73
    $region72: #{tpu_custom_call.1} parent=1 // pred_region
      %184 = dma.done [#allocation9], 256
    $region73: #{tpu_custom_call.1} parent=1 // pred_fallthru
      _
    // Predicated region
    $region74: #{tpu_custom_call.1} parent=1 // pred_check
      _
    $region75: #{tpu_custom_call.1} parent=1 // pred_check_branch
      %186 = sbr.rel (0) target = $region77
    $region76: #{tpu_custom_call.1} parent=1 // pred_region
      %187 = dma.done [#allocation12], 16
    $region77: #{tpu_custom_call.1} parent=1 // pred_fallthru
      _
    // Predicated region
    $region78: #{tpu_custom_call.1} parent=1 // pred_check
      _
    $region79: #{tpu_custom_call.1} parent=1 // pred_check_branch
      %189 = sbr.rel (0) target = $region81
    $region80: #{tpu_custom_call.1} parent=1 // pred_region
      %190 = dma.done [#allocation12], 256
    $region81: #{tpu_custom_call.1} parent=1 // pred_fallthru
      _
    // Predicated region
    $region82: #{tpu_custom_call.1} parent=1 // pred_check
      _
    $region83: #{tpu_custom_call.1} parent=1 // pred_check_branch
      %192 = sbr.rel (0) target = $region85
    $region84: #{tpu_custom_call.1} parent=1 // pred_region
      %193 = dma.done [#allocation15], 16
    $region85: #{tpu_custom_call.1} parent=1 // pred_fallthru
      _
    // Predicated region
    $region86: #{tpu_custom_call.1} parent=1 // pred_check
      _
    $region87: #{tpu_custom_call.1} parent=1 // pred_check_branch
      %195 = sbr.rel (0) target = $region89
    $region88: #{tpu_custom_call.1} parent=1 // pred_region
      %196 = dma.done [#allocation15], 256
    $region89: #{tpu_custom_call.1} parent=1 // pred_fallthru
      _
    // Predicated region
    $region90: #{tpu_custom_call.1} parent=1 // pred_check
      _
    $region91: #{tpu_custom_call.1} parent=1 // pred_check_branch
      %198 = sbr.rel (0) target = $region93
    $region92: #{tpu_custom_call.1} parent=1 // pred_region
      %199 = dma.done [#allocation18], 16
    $region93: #{tpu_custom_call.1} parent=1 // pred_fallthru
      _
    // Predicated region
    $region94: #{tpu_custom_call.1} parent=1 // pred_check
      _
    $region95: #{tpu_custom_call.1} parent=1 // pred_check_branch
      %201 = sbr.rel (0) target = $region97
    $region96: #{tpu_custom_call.1} parent=1 // pred_region
      %202 = dma.done [#allocation18], 16
    $region97: #{tpu_custom_call.1} parent=1 // pred_fallthru
      _
    // Predicated region
    $region98: #{tpu_custom_call.1} parent=1 // pred_check
      _
    $region99: #{tpu_custom_call.1} parent=1 // pred_check_branch
      %204 = sbr.rel (0) target = $region101
    $region100: #{tpu_custom_call.1} parent=1 // pred_region
      %205 = dma.done [#allocation21], 16
    $region101: #{tpu_custom_call.1} parent=1 // pred_fallthru
      _
    // Predicated region
    $region102: #{tpu_custom_call.1} parent=1 // pred_check
      _
    $region103: #{tpu_custom_call.1} parent=1 // pred_check_branch
      %207 = sbr.rel (0) target = $region105
    $region104: #{tpu_custom_call.1} parent=1 // pred_region
      %208 = dma.done [#allocation21], 64
    $region105: #{tpu_custom_call.1} parent=1 // pred_fallthru
      _
    %v210 = vld [vmem:[#allocation2] sm:$0xff]
    %v211 = vld [vmem:[#allocation2 + $0x8] sm:$0xff]
    %v212 = vld [vmem:[#allocation5] sm:$0xff]
    %v213 = vld [vmem:[#allocation5 + $0x8] sm:$0xff]
    %v214 = vadd.f32 %v210, %v212
    %v215 = vadd.f32 %v211, %v213
    %v216 = vpack.c.bf16 %v215, %v214
    %v217 = vld [vmem:[#allocation7] sm:$0xf]
    %v218 = vld [vmem:[#allocation7 + $0x4] sm:$0xf]
    %v219 = vld [vmem:[#allocation7 + $0x8] sm:$0xf]
    %v220 = vld [vmem:[#allocation7 + $0xc] sm:$0xf]
    %v221 = vld [vmem:[#allocation8] sm:$0x1]
    %v223 = vlaneseq
    %v224 = vshrl.u32 %v223, 7
    %v225 = vsub.s32 0, %v224
    %v226 = vrot.slane %v221, %v225
    %v232 = vunpack.c.l.b16 %v217
    %v233 = vunpack.c.l.b16 %v218
    %v234 = vunpack.c.l.b16 %v219
    %v235 = vunpack.c.l.b16 %v220
    %v236 = vpack.c.b16 %v233, %v232
    %v237 = vpack.c.b16 %v235, %v234
    %vm240 = vcmask 261120
    %v242 = vsel %vm240, %v216, 0
    %244 = vmatprep.subr.bf16.mxu0 0
    %245 = vmatpush1.bf16.msra.mxu0 %v236
    %246 = vmatprep.subr.bf16.mxu0 0
    %247 = vmatpush1.bf16.msra.mxu0 %v237
    %248 = vmatprep.subr.bf16.mxu0 0
    %249 = vmatpush1.bf16.msra.mxu0 0
    %250 = vmatprep.subr.bf16.mxu0 0
    %251 = vmatpush1.bf16.msra.mxu0 0
    %252 = vmatprep.subr.bf16.mxu0 0
    %253 = vmatpush1.bf16.msra.mxu0 0
    %254 = vmatprep.subr.bf16.mxu0 0
    %255 = vmatpush1.bf16.msra.mxu0 0
    %256 = vmatprep.subr.bf16.mxu0 0
    %257 = vmatpush1.bf16.msra.mxu0 0
    %258 = vmatprep.subr.bf16.mxu0 0
    %259 = vmatpush1.bf16.msra.mxu0 0
    %260 = vmatprep.subr.bf16.mxu0 0
    %261 = vmatpush1.bf16.msra.mxu0 0
    %262 = vmatprep.subr.bf16.mxu0 0
    %263 = vmatpush1.bf16.msra.mxu0 0
    %264 = vmatprep.subr.bf16.mxu0 0
    %265 = vmatpush1.bf16.msra.mxu0 0
    %266 = vmatprep.subr.bf16.mxu0 0
    %267 = vmatpush1.bf16.msra.mxu0 0
    %268 = vmatprep.subr.bf16.mxu0 0
    %269 = vmatpush1.bf16.msra.mxu0 0
    %270 = vmatprep.subr.bf16.mxu0 0
    %271 = vmatpush1.bf16.msra.mxu0 0
    %272 = vmatprep.subr.bf16.mxu0 0
    %273 = vmatpush1.bf16.msra.mxu0 0
    %274 = vmatprep.subr.bf16.mxu0 0
    %275 = vmatpush1.bf16.msra.mxu0 0
    %276 = vmatprep.mubr.bf16.mxu0 0
    %277 = vmatmul.mubr.bf16.gmra.mrb[0].mxu0 %v242
    %v278 = vpop.f32.mrb[0].mxu0
    %v279 = vadd.f32 %v226, %v278
    %v280 = vpop.f32.mrb[0].mxu0
    %v281 = vpop.f32.mrb[0].mxu0
    %v282 = vadd.f32 %v226, %v281
    %v283 = vpop.f32.mrb[0].mxu0
    %284 = vdwg.mxu0
    %v285 = vld [vmem:[#allocation10] sm:$0xf]
    %v286 = vld [vmem:[#allocation10 + $0x4] sm:$0xf]
    %v287 = vld [vmem:[#allocation10 + $0x8] sm:$0xf]
    %v288 = vld [vmem:[#allocation10 + $0xc] sm:$0xf]
    %v289 = vld [vmem:[#allocation11] sm:$0x1]
    %v291 = vlaneseq
    %v292 = vshrl.u32 %v291, 7
    %v293 = vsub.s32 0, %v292
    %v294 = vrot.slane %v289, %v293
    %v300 = vunpack.c.l.b16 %v285
    %v301 = vunpack.c.l.b16 %v286
    %v302 = vunpack.c.l.b16 %v287
    %v303 = vunpack.c.l.b16 %v288
    %v304 = vpack.c.b16 %v301, %v300
    %v305 = vpack.c.b16 %v303, %v302
    %308 = vmatprep.subr.bf16.mxu0 0
    %309 = vmatpush1.bf16.msra.mxu0 %v304
    %310 = vmatprep.subr.bf16.mxu0 0
    %311 = vmatpush1.bf16.msra.mxu0 %v305
    %312 = vmatprep.subr.bf16.mxu0 0
    %313 = vmatpush1.bf16.msra.mxu0 0
    %314 = vmatprep.subr.bf16.mxu0 0
    %315 = vmatpush1.bf16.msra.mxu0 0
    %316 = vmatprep.subr.bf16.mxu0 0
    %317 = vmatpush1.bf16.msra.mxu0 0
    %318 = vmatprep.subr.bf16.mxu0 0
    %319 = vmatpush1.bf16.msra.mxu0 0
    %320 = vmatprep.subr.bf16.mxu0 0
    %321 = vmatpush1.bf16.msra.mxu0 0
    %322 = vmatprep.subr.bf16.mxu0 0
    %323 = vmatpush1.bf16.msra.mxu0 0
    %324 = vmatprep.subr.bf16.mxu0 0
    %325 = vmatpush1.bf16.msra.mxu0 0
    %326 = vmatprep.subr.bf16.mxu0 0
    %327 = vmatpush1.bf16.msra.mxu0 0
    %328 = vmatprep.subr.bf16.mxu0 0
    %329 = vmatpush1.bf16.msra.mxu0 0
    %330 = vmatprep.subr.bf16.mxu0 0
    %331 = vmatpush1.bf16.msra.mxu0 0
    %332 = vmatprep.subr.bf16.mxu0 0
    %333 = vmatpush1.bf16.msra.mxu0 0
    %334 = vmatprep.subr.bf16.mxu0 0
    %335 = vmatpush1.bf16.msra.mxu0 0
    %336 = vmatprep.subr.bf16.mxu0 0
    %337 = vmatpush1.bf16.msra.mxu0 0
    %338 = vmatprep.subr.bf16.mxu0 0
    %339 = vmatpush1.bf16.msra.mxu0 0
    %340 = vmatprep.mubr.bf16.mxu0 0
    %341 = vmatmul.mubr.bf16.gmra.mrb[0].mxu0 %v242
    %v342 = vpop.f32.mrb[0].mxu0
    %v343 = vadd.f32 %v294, %v342
    %v344 = vpop.f32.mrb[0].mxu0
    %v345 = vpop.f32.mrb[0].mxu0
    %v346 = vadd.f32 %v294, %v345
    %v347 = vpop.f32.mrb[0].mxu0
    %348 = vdwg.mxu0
    %v349 = vpack.c.bf16 %v211, %v210
    %v350 = vld [vmem:[#allocation13] sm:$0xf]
    %v351 = vld [vmem:[#allocation13 + $0x4] sm:$0xf]
    %v352 = vld [vmem:[#allocation13 + $0x8] sm:$0xf]
    %v353 = vld [vmem:[#allocation13 + $0xc] sm:$0xf]
    %v354 = vld [vmem:[#allocation14] sm:$0x1]
    %v356 = vlaneseq
    %v357 = vshrl.u32 %v356, 7
    %v358 = vsub.s32 0, %v357
    %v359 = vrot.slane %v354, %v358
    %v365 = vunpack.c.l.b16 %v350
    %v366 = vunpack.c.l.b16 %v351
    %v367 = vunpack.c.l.b16 %v352
    %v368 = vunpack.c.l.b16 %v353
    %v369 = vpack.c.b16 %v366, %v365
    %v370 = vpack.c.b16 %v368, %v367
    %v374 = vsel %vm240, %v349, 0
    %376 = vmatprep.subr.bf16.mxu0 0
    %377 = vmatpush1.bf16.msra.mxu0 %v369
    %378 = vmatprep.subr.bf16.mxu0 0
    %379 = vmatpush1.bf16.msra.mxu0 %v370
    %380 = vmatprep.subr.bf16.mxu0 0
    %381 = vmatpush1.bf16.msra.mxu0 0
    %382 = vmatprep.subr.bf16.mxu0 0
    %383 = vmatpush1.bf16.msra.mxu0 0
    %384 = vmatprep.subr.bf16.mxu0 0
    %385 = vmatpush1.bf16.msra.mxu0 0
    %386 = vmatprep.subr.bf16.mxu0 0
    %387 = vmatpush1.bf16.msra.mxu0 0
    %388 = vmatprep.subr.bf16.mxu0 0
    %389 = vmatpush1.bf16.msra.mxu0 0
    %390 = vmatprep.subr.bf16.mxu0 0
    %391 = vmatpush1.bf16.msra.mxu0 0
    %392 = vmatprep.subr.bf16.mxu0 0
    %393 = vmatpush1.bf16.msra.mxu0 0
    %394 = vmatprep.subr.bf16.mxu0 0
    %395 = vmatpush1.bf16.msra.mxu0 0
    %396 = vmatprep.subr.bf16.mxu0 0
    %397 = vmatpush1.bf16.msra.mxu0 0
    %398 = vmatprep.subr.bf16.mxu0 0
    %399 = vmatpush1.bf16.msra.mxu0 0
    %400 = vmatprep.subr.bf16.mxu0 0
    %401 = vmatpush1.bf16.msra.mxu0 0
    %402 = vmatprep.subr.bf16.mxu0 0
    %403 = vmatpush1.bf16.msra.mxu0 0
    %404 = vmatprep.subr.bf16.mxu0 0
    %405 = vmatpush1.bf16.msra.mxu0 0
    %406 = vmatprep.subr.bf16.mxu0 0
    %407 = vmatpush1.bf16.msra.mxu0 0
    %408 = vmatprep.mubr.bf16.mxu0 0
    %409 = vmatmul.mubr.bf16.gmra.mrb[0].mxu0 %v374
    %v410 = vpop.f32.mrb[0].mxu0
    %v411 = vadd.f32 %v359, %v410
    %v412 = vpop.f32.mrb[0].mxu0
    %v413 = vpop.f32.mrb[0].mxu0
    %v414 = vadd.f32 %v359, %v413
    %v415 = vpop.f32.mrb[0].mxu0
    %416 = vdwg.mxu0
    %v417 = vld [vmem:[#allocation22] sm:$0x1]
    %v418 = vld [vmem:[#allocation22 + $0x1] sm:$0x1]
    %v419 = vld [vmem:[#allocation22 + $0x2] sm:$0x1]
    %v420 = vld [vmem:[#allocation22 + $0x3] sm:$0x1]
    %v425 = vlaneseq
    %v426 = vshrl.u32 %v425, 7
    %v427 = vsub.s32 0, %v426
    %v428 = vrot.slane %v417, %v427
    %v429 = vlaneseq
    %v430 = vshrl.u32 %v429, 7
    %v431 = vsub.s32 0, %v430
    %v432 = vrot.slane %v418, %v431
    %v433 = vlaneseq
    %v434 = vshrl.u32 %v433, 7
    %v435 = vsub.s32 0, %v434
    %v436 = vrot.slane %v419, %v435
    %v437 = vlaneseq
    %v438 = vshrl.u32 %v437, 7
    %v439 = vsub.s32 0, %v438
    %v440 = vrot.slane %v420, %v439
    %v445 = vmul.f32 %v279, %v428
    %v446 = vmul.f32 %v279, %v432
    %v447 = vmul.f32 %v279, %v436
    %v448 = vmul.f32 %v279, %v440
    %v449 = vmul.f32 %v282, %v428
    %v450 = vmul.f32 %v282, %v432
    %v451 = vmul.f32 %v282, %v436
    %v452 = vmul.f32 %v282, %v440
    %v453 = vpack.c.bf16 %v343, %v343
    %v454 = vpack.c.bf16 %v346, %v346
    %v455 = vpack.c.bf16 %v411, %v411
    %v456 = vpack.c.bf16 %v414, %v414
    %v457 = vpack.c.bf16 %v446, %v445
    %v458 = vpack.c.bf16 %v448, %v447
    %v459 = vpack.c.bf16 %v450, %v449
    %v460 = vpack.c.bf16 %v452, %v451
    %v462 = vsel %vm240, %v457, 0
    %v465 = vsel %vm240, %v458, 0
    %v468 = vsel %vm240, %v453, 0
    %470 = vmatprep.subr.bf16.mxu0 0
    %471 = vmatpush1.bf16.xpose.msra.mxu0 %v468
    %472 = vmatprep.subr.bf16.mxu0 0
    %473 = vmatpush1.bf16.xpose.msra.mxu0 0
    %474 = vmatprep.subr.bf16.mxu0 0
    %475 = vmatpush1.bf16.xpose.msra.mxu0 0
    %476 = vmatprep.subr.bf16.mxu0 0
    %477 = vmatpush1.bf16.xpose.msra.mxu0 0
    %478 = vmatprep.subr.bf16.mxu0 0
    %479 = vmatpush1.bf16.xpose.msra.mxu0 0
    %480 = vmatprep.subr.bf16.mxu0 0
    %481 = vmatpush1.bf16.xpose.msra.mxu0 0
    %482 = vmatprep.subr.bf16.mxu0 0
    %483 = vmatpush1.bf16.xpose.msra.mxu0 0
    %484 = vmatprep.subr.bf16.mxu0 0
    %485 = vmatpush1.bf16.xpose.msra.mxu0 0
    %486 = vmatprep.subr.bf16.mxu0 0
    %487 = vmatpush1.bf16.xpose.msra.mxu0 0
    %488 = vmatprep.subr.bf16.mxu0 0
    %489 = vmatpush1.bf16.xpose.msra.mxu0 0
    %490 = vmatprep.subr.bf16.mxu0 0
    %491 = vmatpush1.bf16.xpose.msra.mxu0 0
    %492 = vmatprep.subr.bf16.mxu0 0
    %493 = vmatpush1.bf16.xpose.msra.mxu0 0
    %494 = vmatprep.subr.bf16.mxu0 0
    %495 = vmatpush1.bf16.xpose.msra.mxu0 0
    %496 = vmatprep.subr.bf16.mxu0 0
    %497 = vmatpush1.bf16.xpose.msra.mxu0 0
    %498 = vmatprep.subr.bf16.mxu0 0
    %499 = vmatpush1.bf16.xpose.msra.mxu0 0
    %500 = vmatprep.subr.bf16.mxu0 0
    %501 = vmatpush1.bf16.xpose.msra.mxu0 0
    %502 = vmatprep.mubr.bf16.mxu0 0
    %503 = vmatmul.mubr.bf16.gmra.mrb[0].mxu0 %v462
    %v504 = vpop.f32.mrb[0].mxu0
    %v505 = vadd.f32 0.0, %v504
    %v506 = vpop.f32.mrb[0].mxu0
    %v507 = vpop.f32.mrb[0].mxu0
    %v508 = vadd.f32 0.0, %v507
    %v509 = vpop.f32.mrb[0].mxu0
    %510 = vmatprep.mubr.bf16.mxu0 0
    %511 = vmatmul.mubr.bf16.gmra.mrb[0].mxu0 %v465
    %v512 = vpop.f32.mrb[0].mxu0
    %v513 = vadd.f32 0.0, %v512
    %v514 = vpop.f32.mrb[0].mxu0
    %v515 = vpop.f32.mrb[0].mxu0
    %v516 = vadd.f32 0.0, %v515
    %v517 = vpop.f32.mrb[0].mxu0
    %518 = vdwg.mxu0
    %v520 = vsel %vm240, %v459, 0
    %v523 = vsel %vm240, %v460, 0
    %v526 = vsel %vm240, %v454, 0
    %528 = vmatprep.subr.bf16.mxu0 0
    %529 = vmatpush1.bf16.xpose.msra.mxu0 %v526
    %530 = vmatprep.subr.bf16.mxu0 0
    %531 = vmatpush1.bf16.xpose.msra.mxu0 0
    %532 = vmatprep.subr.bf16.mxu0 0
    %533 = vmatpush1.bf16.xpose.msra.mxu0 0
    %534 = vmatprep.subr.bf16.mxu0 0
    %535 = vmatpush1.bf16.xpose.msra.mxu0 0
    %536 = vmatprep.subr.bf16.mxu0 0
    %537 = vmatpush1.bf16.xpose.msra.mxu0 0
    %538 = vmatprep.subr.bf16.mxu0 0
    %539 = vmatpush1.bf16.xpose.msra.mxu0 0
    %540 = vmatprep.subr.bf16.mxu0 0
    %541 = vmatpush1.bf16.xpose.msra.mxu0 0
    %542 = vmatprep.subr.bf16.mxu0 0
    %543 = vmatpush1.bf16.xpose.msra.mxu0 0
    %544 = vmatprep.subr.bf16.mxu0 0
    %545 = vmatpush1.bf16.xpose.msra.mxu0 0
    %546 = vmatprep.subr.bf16.mxu0 0
    %547 = vmatpush1.bf16.xpose.msra.mxu0 0
    %548 = vmatprep.subr.bf16.mxu0 0
    %549 = vmatpush1.bf16.xpose.msra.mxu0 0
    %550 = vmatprep.subr.bf16.mxu0 0
    %551 = vmatpush1.bf16.xpose.msra.mxu0 0
    %552 = vmatprep.subr.bf16.mxu0 0
    %553 = vmatpush1.bf16.xpose.msra.mxu0 0
    %554 = vmatprep.subr.bf16.mxu0 0
    %555 = vmatpush1.bf16.xpose.msra.mxu0 0
    %556 = vmatprep.subr.bf16.mxu0 0
    %557 = vmatpush1.bf16.xpose.msra.mxu0 0
    %558 = vmatprep.subr.bf16.mxu0 0
    %559 = vmatpush1.bf16.xpose.msra.mxu0 0
    %560 = vmatprep.mubr.bf16.mxu0 0
    %561 = vmatmul.mubr.bf16.gmra.mrb[0].mxu0 %v520
    %v562 = vpop.f32.mrb[0].mxu0
    %v563 = vadd.f32 0.0, %v562
    %v564 = vpop.f32.mrb[0].mxu0
    %v565 = vpop.f32.mrb[0].mxu0
    %v566 = vadd.f32 0.0, %v565
    %v567 = vpop.f32.mrb[0].mxu0
    %568 = vmatprep.mubr.bf16.mxu0 0
    %569 = vmatmul.mubr.bf16.gmra.mrb[0].mxu0 %v523
    %v570 = vpop.f32.mrb[0].mxu0
    %v571 = vadd.f32 0.0, %v570
    %v572 = vpop.f32.mrb[0].mxu0
    %v573 = vpop.f32.mrb[0].mxu0
    %v574 = vadd.f32 0.0, %v573
    %v575 = vpop.f32.mrb[0].mxu0
    %576 = vdwg.mxu0
    %vm577 = vcmask 64512
    %v578 = vsel %vm577, %v505, -inf
    %579 = vmax.xlane.f32.xlu0 %v578
    %v580 = vpop.xlane.xlu0 %579
    %v581 = vsel %vm577, %v508, -inf
    %582 = vmax.xlane.f32.xlu0 %v581
    %v583 = vpop.xlane.xlu0 %582
    %v584 = vsel %vm577, %v513, -inf
    %585 = vmax.xlane.f32.xlu0 %v584
    %v586 = vpop.xlane.xlu0 %585
    %v587 = vsel %vm577, %v516, -inf
    %588 = vmax.xlane.f32.xlu0 %v587
    %v589 = vpop.xlane.xlu0 %588
    %v590 = vsel %vm577, %v563, -inf
    %591 = vmax.xlane.f32.xlu0 %v590
    %v592 = vpop.xlane.xlu0 %591
    %v593 = vsel %vm577, %v566, -inf
    %594 = vmax.xlane.f32.xlu0 %v593
    %v595 = vpop.xlane.xlu0 %594
    %v596 = vsel %vm577, %v571, -inf
    %597 = vmax.xlane.f32.xlu0 %v596
    %v598 = vpop.xlane.xlu0 %597
    %v599 = vsel %vm577, %v574, -inf
    %600 = vmax.xlane.f32.xlu0 %v599
    %v601 = vpop.xlane.xlu0 %600
    %v602 = vsub.f32 %v505, %v580
    %v603 = vsub.f32 %v508, %v583
    %v604 = vsub.f32 %v513, %v586
    %v605 = vsub.f32 %v516, %v589
    %v606 = vsub.f32 %v563, %v592
    %v607 = vsub.f32 %v566, %v595
    %v608 = vsub.f32 %v571, %v598
    %v609 = vsub.f32 %v574, %v601
    %v610 = vmul.f32 %v602, 1.442695
    %v611 = vpow.pop %v610
    %v612 = vmul.f32 %v603, 1.442695
    %v613 = vpow.pop %v612
    %v614 = vmul.f32 %v604, 1.442695
    %v615 = vpow.pop %v614
    %v616 = vmul.f32 %v605, 1.442695
    %v617 = vpow.pop %v616
    %v618 = vmul.f32 %v606, 1.442695
    %v619 = vpow.pop %v618
    %v620 = vmul.f32 %v607, 1.442695
    %v621 = vpow.pop %v620
    %v622 = vmul.f32 %v608, 1.442695
    %v623 = vpow.pop %v622
    %v624 = vmul.f32 %v609, 1.442695
    %v625 = vpow.pop %v624
    %v626 = vsel %vm577, %v611, 0.0
    %627 = vadd.xlane.f32.xlu0 %v626
    %v628 = vpop.xlane.xlu0 %627
    %v629 = vsel %vm577, %v613, 0.0
    %630 = vadd.xlane.f32.xlu0 %v629
    %v631 = vpop.xlane.xlu0 %630
    %v632 = vsel %vm577, %v615, 0.0
    %633 = vadd.xlane.f32.xlu0 %v632
    %v634 = vpop.xlane.xlu0 %633
    %v635 = vsel %vm577, %v617, 0.0
    %636 = vadd.xlane.f32.xlu0 %v635
    %v637 = vpop.xlane.xlu0 %636
    %v638 = vsel %vm577, %v619, 0.0
    %639 = vadd.xlane.f32.xlu0 %v638
    %v640 = vpop.xlane.xlu0 %639
    %v641 = vsel %vm577, %v621, 0.0
    %642 = vadd.xlane.f32.xlu0 %v641
    %v643 = vpop.xlane.xlu0 %642
    %v644 = vsel %vm577, %v623, 0.0
    %645 = vadd.xlane.f32.xlu0 %v644
    %v646 = vpop.xlane.xlu0 %645
    %v647 = vsel %vm577, %v625, 0.0
    %648 = vadd.xlane.f32.xlu0 %v647
    %v649 = vpop.xlane.xlu0 %648
    %v650 = vrcp.pop %v628
    %v651 = vrcp.pop %v631
    %v652 = vrcp.pop %v634
    %v653 = vrcp.pop %v637
    %v654 = vrcp.pop %v640
    %v655 = vrcp.pop %v643
    %v656 = vrcp.pop %v646
    %v657 = vrcp.pop %v649
    %v658 = vmul.f32 %v611, %v650
    %v659 = vmul.f32 %v613, %v651
    %v660 = vmul.f32 %v615, %v652
    %v661 = vmul.f32 %v617, %v653
    %v662 = vmul.f32 %v619, %v654
    %v663 = vmul.f32 %v621, %v655
    %v664 = vmul.f32 %v623, %v656
    %v665 = vmul.f32 %v625, %v657
    %v666 = vpack.c.bf16 %v659, %v658
    %v667 = vpack.c.bf16 %v661, %v660
    %v668 = vpack.c.bf16 %v663, %v662
    %v669 = vpack.c.bf16 %v665, %v664
    %v671 = vsel %vm577, %v666, 0
    %v674 = vsel %vm577, %v667, 0
    %vm676 = vcmask 1043456
    %v678 = vsel %vm676, %v455, 0
    %680 = vmatprep.subr.bf16.mxu0 0
    %681 = vmatpush1.bf16.msra.mxu0 %v678
    %682 = vmatprep.subr.bf16.mxu0 0
    %683 = vmatpush1.bf16.msra.mxu0 0
    %684 = vmatprep.subr.bf16.mxu0 0
    %685 = vmatpush1.bf16.msra.mxu0 0
    %686 = vmatprep.subr.bf16.mxu0 0
    %687 = vmatpush1.bf16.msra.mxu0 0
    %688 = vmatprep.subr.bf16.mxu0 0
    %689 = vmatpush1.bf16.msra.mxu0 0
    %690 = vmatprep.subr.bf16.mxu0 0
    %691 = vmatpush1.bf16.msra.mxu0 0
    %692 = vmatprep.subr.bf16.mxu0 0
    %693 = vmatpush1.bf16.msra.mxu0 0
    %694 = vmatprep.subr.bf16.mxu0 0
    %695 = vmatpush1.bf16.msra.mxu0 0
    %696 = vmatprep.subr.bf16.mxu0 0
    %697 = vmatpush1.bf16.msra.mxu0 0
    %698 = vmatprep.subr.bf16.mxu0 0
    %699 = vmatpush1.bf16.msra.mxu0 0
    %700 = vmatprep.subr.bf16.mxu0 0
    %701 = vmatpush1.bf16.msra.mxu0 0
    %702 = vmatprep.subr.bf16.mxu0 0
    %703 = vmatpush1.bf16.msra.mxu0 0
    %704 = vmatprep.subr.bf16.mxu0 0
    %705 = vmatpush1.bf16.msra.mxu0 0
    %706 = vmatprep.subr.bf16.mxu0 0
    %707 = vmatpush1.bf16.msra.mxu0 0
    %708 = vmatprep.subr.bf16.mxu0 0
    %709 = vmatpush1.bf16.msra.mxu0 0
    %710 = vmatprep.subr.bf16.mxu0 0
    %711 = vmatpush1.bf16.msra.mxu0 0
    %712 = vmatprep.mubr.bf16.mxu0 0
    %713 = vmatmul.mubr.bf16.gmra.mrb[0].mxu0 %v671
    %v714 = vpop.f32.mrb[0].mxu0
    %v715 = vadd.f32 0.0, %v714
    %v716 = vpop.f32.mrb[0].mxu0
    %v717 = vpop.f32.mrb[0].mxu0
    %v718 = vadd.f32 0.0, %v717
    %v719 = vpop.f32.mrb[0].mxu0
    %720 = vmatprep.mubr.bf16.mxu0 0
    %721 = vmatmul.mubr.bf16.gmra.mrb[0].mxu0 %v674
    %v722 = vpop.f32.mrb[0].mxu0
    %v723 = vadd.f32 0.0, %v722
    %v724 = vpop.f32.mrb[0].mxu0
    %v725 = vpop.f32.mrb[0].mxu0
    %v726 = vadd.f32 0.0, %v725
    %v727 = vpop.f32.mrb[0].mxu0
    %728 = vdwg.mxu0
    %v730 = vsel %vm577, %v668, 0
    %v733 = vsel %vm577, %v669, 0
    %v736 = vsel %vm676, %v456, 0
    %738 = vmatprep.subr.bf16.mxu0 0
    %739 = vmatpush1.bf16.msra.mxu0 %v736
    %740 = vmatprep.subr.bf16.mxu0 0
    %741 = vmatpush1.bf16.msra.mxu0 0
    %742 = vmatprep.subr.bf16.mxu0 0
    %743 = vmatpush1.bf16.msra.mxu0 0
    %744 = vmatprep.subr.bf16.mxu0 0
    %745 = vmatpush1.bf16.msra.mxu0 0
    %746 = vmatprep.subr.bf16.mxu0 0
    %747 = vmatpush1.bf16.msra.mxu0 0
    %748 = vmatprep.subr.bf16.mxu0 0
    %749 = vmatpush1.bf16.msra.mxu0 0
    %750 = vmatprep.subr.bf16.mxu0 0
    %751 = vmatpush1.bf16.msra.mxu0 0
    %752 = vmatprep.subr.bf16.mxu0 0
    %753 = vmatpush1.bf16.msra.mxu0 0
    %754 = vmatprep.subr.bf16.mxu0 0
    %755 = vmatpush1.bf16.msra.mxu0 0
    %756 = vmatprep.subr.bf16.mxu0 0
    %757 = vmatpush1.bf16.msra.mxu0 0
    %758 = vmatprep.subr.bf16.mxu0 0
    %759 = vmatpush1.bf16.msra.mxu0 0
    %760 = vmatprep.subr.bf16.mxu0 0
    %761 = vmatpush1.bf16.msra.mxu0 0
    %762 = vmatprep.subr.bf16.mxu0 0
    %763 = vmatpush1.bf16.msra.mxu0 0
    %764 = vmatprep.subr.bf16.mxu0 0
    %765 = vmatpush1.bf16.msra.mxu0 0
    %766 = vmatprep.subr.bf16.mxu0 0
    %767 = vmatpush1.bf16.msra.mxu0 0
    %768 = vmatprep.subr.bf16.mxu0 0
    %769 = vmatpush1.bf16.msra.mxu0 0
    %770 = vmatprep.mubr.bf16.mxu0 0
    %771 = vmatmul.mubr.bf16.gmra.mrb[0].mxu0 %v730
    %v772 = vpop.f32.mrb[0].mxu0
    %v773 = vadd.f32 0.0, %v772
    %v774 = vpop.f32.mrb[0].mxu0
    %v775 = vpop.f32.mrb[0].mxu0
    %v776 = vadd.f32 0.0, %v775
    %v777 = vpop.f32.mrb[0].mxu0
    %778 = vmatprep.mubr.bf16.mxu0 0
    %779 = vmatmul.mubr.bf16.gmra.mrb[0].mxu0 %v733
    %v780 = vpop.f32.mrb[0].mxu0
    %v781 = vadd.f32 0.0, %v780
    %v782 = vpop.f32.mrb[0].mxu0
    %v783 = vpop.f32.mrb[0].mxu0
    %v784 = vadd.f32 0.0, %v783
    %v785 = vpop.f32.mrb[0].mxu0
    %786 = vdwg.mxu0
    %v787 = vmul.f32 %v715, %v428
    %v788 = vmul.f32 %v718, %v432
    %v789 = vmul.f32 %v723, %v436
    %v790 = vmul.f32 %v726, %v440
    %v791 = vmul.f32 %v773, %v428
    %v792 = vmul.f32 %v776, %v432
    %v793 = vmul.f32 %v781, %v436
    %v794 = vmul.f32 %v784, %v440
    %v795 = vsel %vm240, %v787, 0.0
    %v796 = vsel %vm240, %v788, 0.0
    %v797 = vadd.f32 %v795, %v796
    %v798 = vsel %vm240, %v789, 0.0
    %v799 = vadd.f32 %v797, %v798
    %v800 = vsel %vm240, %v790, 0.0
    %v801 = vadd.f32 %v799, %v800
    %v802 = vsel %vm240, %v791, 0.0
    %v803 = vsel %vm240, %v792, 0.0
    %v804 = vadd.f32 %v802, %v803
    %v805 = vsel %vm240, %v793, 0.0
    %v806 = vadd.f32 %v804, %v805
    %v807 = vsel %vm240, %v794, 0.0
    %v808 = vadd.f32 %v806, %v807
    %v809 = vpack.c.bf16 %v808, %v801
    %v810 = vld [vmem:[#allocation16] sm:$0xf]
    %v811 = vld [vmem:[#allocation16 + $0x4] sm:$0xf]
    %v812 = vld [vmem:[#allocation16 + $0x8] sm:$0xf]
    %v813 = vld [vmem:[#allocation16 + $0xc] sm:$0xf]
    %v814 = vld [vmem:[#allocation17] sm:$0x1]
    %v816 = vlaneseq
    %v817 = vshrl.u32 %v816, 7
    %v818 = vsub.s32 0, %v817
    %v819 = vrot.slane %v814, %v818
    %v825 = vunpack.c.l.b16 %v810
    %v826 = vunpack.c.l.b16 %v811
    %v827 = vunpack.c.l.b16 %v812
    %v828 = vunpack.c.l.b16 %v813
    %v829 = vpack.c.b16 %v826, %v825
    %v830 = vpack.c.b16 %v828, %v827
    %v834 = vsel %vm240, %v809, 0
    %836 = vmatprep.subr.bf16.mxu0 0
    %837 = vmatpush1.bf16.msra.mxu0 %v829
    %838 = vmatprep.subr.bf16.mxu0 0
    %839 = vmatpush1.bf16.msra.mxu0 %v830
    %840 = vmatprep.subr.bf16.mxu0 0
    %841 = vmatpush1.bf16.msra.mxu0 0
    %842 = vmatprep.subr.bf16.mxu0 0
    %843 = vmatpush1.bf16.msra.mxu0 0
    %844 = vmatprep.subr.bf16.mxu0 0
    %845 = vmatpush1.bf16.msra.mxu0 0
    %846 = vmatprep.subr.bf16.mxu0 0
    %847 = vmatpush1.bf16.msra.mxu0 0
    %848 = vmatprep.subr.bf16.mxu0 0
    %849 = vmatpush1.bf16.msra.mxu0 0
    %850 = vmatprep.subr.bf16.mxu0 0
    %851 = vmatpush1.bf16.msra.mxu0 0
    %852 = vmatprep.subr.bf16.mxu0 0
    %853 = vmatpush1.bf16.msra.mxu0 0
    %854 = vmatprep.subr.bf16.mxu0 0
    %855 = vmatpush1.bf16.msra.mxu0 0
    %856 = vmatprep.subr.bf16.mxu0 0
    %857 = vmatpush1.bf16.msra.mxu0 0
    %858 = vmatprep.subr.bf16.mxu0 0
    %859 = vmatpush1.bf16.msra.mxu0 0
    %860 = vmatprep.subr.bf16.mxu0 0
    %861 = vmatpush1.bf16.msra.mxu0 0
    %862 = vmatprep.subr.bf16.mxu0 0
    %863 = vmatpush1.bf16.msra.mxu0 0
    %864 = vmatprep.subr.bf16.mxu0 0
    %865 = vmatpush1.bf16.msra.mxu0 0
    %866 = vmatprep.subr.bf16.mxu0 0
    %867 = vmatpush1.bf16.msra.mxu0 0
    %868 = vmatprep.mubr.bf16.mxu0 0
    %869 = vmatmul.mubr.bf16.gmra.mrb[0].mxu0 %v834
    %v870 = vpop.f32.mrb[0].mxu0
    %v871 = vadd.f32 %v819, %v870
    %v872 = vpop.f32.mrb[0].mxu0
    %v873 = vpop.f32.mrb[0].mxu0
    %v874 = vadd.f32 %v819, %v873
    %v875 = vpop.f32.mrb[0].mxu0
    %876 = vdwg.mxu0
    %v877 = vadd.f32 %v871, %v210
    %v878 = vadd.f32 %v874, %v211
    %v879 = vsel %vm240, %v877, 0.0
    %880 = vadd.xlane.f32.xlu0 %v879
    %v881 = vpop.xlane.xlu0 %880
    %v882 = vsel %vm240, %v878, 0.0
    %883 = vadd.xlane.f32.xlu0 %v882
    %v884 = vpop.xlane.xlu0 %883
    %v885 = vrcp.pop 32.0
    %v886 = vmul.f32 %v881, %v885
    %v887 = vmul.f32 %v884, %v885
    %v888 = vsub.f32 %v877, %v886
    %v889 = vsub.f32 %v878, %v887
    %v890 = vmul.f32 %v888, %v888
    %v891 = vmul.f32 %v889, %v889
    %v892 = vsel %vm240, %v890, 0.0
    %893 = vadd.xlane.f32.xlu0 %v892
    %v894 = vpop.xlane.xlu0 %893
    %v895 = vsel %vm240, %v891, 0.0
    %896 = vadd.xlane.f32.xlu0 %v895
    %v897 = vpop.xlane.xlu0 %896
    %v898 = vmul.f32 %v894, %v885
    %v899 = vmul.f32 %v897, %v885
    %v900 = vadd.f32 %v898, 1e-05
    %v901 = vadd.f32 %v899, 1e-05
    %v902 = vrsqrt.pop %v900
    %v903 = vrsqrt.pop %v901
    %v904 = vmul.f32 %v888, %v902
    %v905 = vmul.f32 %v889, %v903
    %v906 = vld [vmem:[#allocation19] sm:$0x1]
    %v908 = vlaneseq
    %v909 = vshrl.u32 %v908, 7
    %v910 = vsub.s32 0, %v909
    %v911 = vrot.slane %v906, %v910
    %v913 = vmul.f32 %v904, %v911
    %v914 = vmul.f32 %v905, %v911
    %v915 = vld [vmem:[#allocation20] sm:$0x1]
    %v917 = vlaneseq
    %v918 = vshrl.u32 %v917, 7
    %v919 = vsub.s32 0, %v918
    %v920 = vrot.slane %v915, %v919
    %v922 = vadd.f32 %v913, %v920
    %v923 = vadd.f32 %v914, %v920
    %924 = vst.msk [vmem:[#allocation23] sm:$0xff] %vm240, %v922
    %925 = vst.msk [vmem:[#allocation23 + $0x8] sm:$0xff] %vm240, %v923
    // Predicated region
    $region106: #{tpu_custom_call.1} parent=1 // pred_check
      _
    $region107: #{tpu_custom_call.1} parent=1 // pred_check_branch
      %927 = sbr.rel (0) target = $region109
    $region108: #{tpu_custom_call.1} parent=1 // pred_region
      %s929 = ssub.s32 256, 256
      %930 = vsyncadd [#allocation4], %s929
      %s931 = sshll.u32 [#allocation23], 4
      %s932 = int_to_ptr.vmem [resolvable:$true] %s931
      %937 = dma.vmem_to_hbm [thread:$0]  %s932, 256, %s13, [#allocation4], 128, 128, 8
    $region109: #{tpu_custom_call.1} parent=1 // pred_fallthru
      _
    // Predicated region
    $region110: #{tpu_custom_call.1} parent=1 // pred_check
      _
    $region111: #{tpu_custom_call.1} parent=1 // pred_check_branch
      %939 = sbr.rel (0) target = $region113
    $region112: #{tpu_custom_call.1} parent=1 // pred_region
      %940 = dma.done [#allocation4], 256
    $region113: #{tpu_custom_call.1} parent=1 // pred_fallthru
      _
    %941 = vsyncpa [#allocation3], 1
    %942 = vsyncpa [#allocation6], 1
    %943 = vsyncpa [#allocation9], 1
    %944 = vsyncpa [#allocation12], 1
    %945 = vsyncpa [#allocation15], 1
    %946 = vsyncpa [#allocation18], 1
    %947 = vsyncpa [#allocation21], 1
    %948 = vsyncpa [#allocation4], 1

</llo_original>
